<compile_context>
chip_gen: v5e
topology: v5e:2x2
jax: 0.10.0
libtpu: 0.0.40
codegen_flags: <defaults>
</compile_context>

<pallas_src>
import functools

import jax
import jax.numpy as jnp
from jax.experimental import pallas as pl
from jax.experimental.pallas import tpu as pltpu


def attn_decoder_kernel(
    # per-chunk input
    emb_ref,        # (TC, Bp, E)  embedded tokens for this chunk (f32)
    # per-call constants
    annot_ref,      # (Bp, LC, H)  annotation vectors (f32)
    hc0_ref,        # (2, Bp, H)   initial LSTM state [h0 | c0] (f32)
    attn_c_ref,     # (2, Bp, LC)  [ans/annot/bias attention const | hid0 @ Wa_hid] (f32)
    gmc_ref,        # (Bp, 7H)     ans @ [Wi_ans | Wmz_ans] + [b_lstm | mlp_b | z1_b] (f32)
    # packed bf16 weights
    w_emb_ref,      # (E, 7H+LC)   [Wi_emb | Wmz_emb | Wa_emb]
    w_h_ref,        # (H, 4H+LC)   [W_hh | Wa_hid]
    w_ct_ref,       # (H, 7H)      [Wi_ct | Wmz_ct]
    w_hn_ref,       # (H, 3H)      Wmz_h
    w_out_ref,      # (H, O)
    w_z2_ref,       # (2H, H)
    w_z3_ref,       # (H, 1)
    bias_ref,       # (1, O+H+1)   [out_b | z2_b | z3_b] (f32)
    # output
    slab_ref,       # (TC, Bp, SLAB) lane-dense packed per-step output: h | c | p_t | pad
    # scratch: LSTM state carried across chunks
    h_scr, c_scr,   # (Bp, H) f32
):
    f32 = jnp.float32
    bf16 = jnp.bfloat16
    TC, Bp, _ = emb_ref.shape
    H = h_scr.shape[-1]
    LC = attn_c_ref.shape[-1]
    O = w_out_ref.shape[-1]
    G = 4 * H                      # packed gate width
    MZ = 3 * H                     # packed mlp|z1 width
    SLAB = slab_ref.shape[-1]

    is_first = pl.program_id(0) == 0

    @pl.when(is_first)
    def _():
        h_scr[...] = hc0_ref[0]
        c_scr[...] = hc0_ref[1]

    def dot(a, w):                 # bf16 MXU operands, f32 accumulation
        return jnp.dot(a.astype(bf16), w, preferred_element_type=f32)

    # loop-invariant loads / slices, hoisted out of the step loop
    annot = annot_ref[...]                 # (Bp, LC, H)
    attn_const = attn_c_ref[0]             # (Bp, LC)  ans/annot/bias contribution
    attn_hid0 = attn_c_ref[1]              # (Bp, LC)  hid0 @ Wa_hid  (global step 0 only)
    gm_const = gmc_ref[...]                # (Bp, 7H)
    w_emb = w_emb_ref[...]
    w_h = w_h_ref[...]
    w_ct = w_ct_ref[...]
    w_hn = w_hn_ref[...]
    w_out = w_out_ref[...]
    w_z2 = w_z2_ref[...]
    w_z3 = w_z3_ref[...]
    b_out = bias_ref[:, 0:O]
    b_z2 = bias_ref[:, O:O + H]
    b_z3 = bias_ref[:, O + H:O + H + 1]
    pad_w = SLAB - (2 * H + O + LC)
    zero_pad = jnp.zeros((Bp, pad_w), f32) if pad_w > 0 else None

    h = h_scr[...]
    c = c_scr[...]

    for tc in range(TC):
        emb = emb_ref[tc]                                    # (Bp, E)

        emb_proj = dot(emb, w_emb)                           # (Bp, G+MZ+LC)
        h_proj = dot(h, w_h)                                 # (Bp, G+LC)

        # attention logits: Wa_emb*emb + Wa_hid*hid + (ans/annot/bias const)
        attn_hid = h_proj[:, G:G + LC]
        if tc == 0:
            # at global step 0 the attention hidden is the *input* hidden, which can
            # differ from the LSTM h0 (c=None case) -> use the precomputed constant.
            w0 = is_first.astype(f32)
            attn_hid = attn_hid + (attn_hid0 - attn_hid) * w0
        attn_logits = jnp.tanh(emb_proj[:, G + MZ:G + MZ + LC] + attn_hid + attn_const)

        # softmax (probabilities for c_t) + exact log-softmax (for p_t)
        m = jnp.max(attn_logits, axis=-1, keepdims=True)
        e = jnp.exp(attn_logits - m)
        s = jnp.sum(e, axis=-1, keepdims=True)
        attn_w = e * pl.reciprocal(s, approx=True)           # (Bp, LC)
        log_attn = (attn_logits - m) - jnp.log(s)

        # c_t = bmm(attn_w[:,None,:], annot)
        c_t = jnp.sum(attn_w[:, :, None] * annot, axis=1)    # (Bp, H)

        # packed gates|mlp|z1 pre-activations
        gm = emb_proj[:, :G + MZ] + dot(c_t, w_ct) + gm_const        # (Bp, G+MZ)
        gates = gm[:, :G] + h_proj[:, :G]                            # (Bp, 4H) [i|f|g|o]
        i_g = jax.nn.sigmoid(gates[:, 0:H])
        f_g = jax.nn.sigmoid(gates[:, H:2 * H])
        g_g = jnp.tanh(gates[:, 2 * H:3 * H])
        o_g = jax.nn.sigmoid(gates[:, 3 * H:4 * H])
        c = f_g * c + i_g * g_g
        h = o_g * jnp.tanh(c)                                        # LSTM output

        # mlp | z1 head (h_new contribution added post-LSTM)
        mz = gm[:, G:G + MZ] + dot(h, w_hn)                  # (Bp, 3H) = e_t | z1_pre
        e_t = mz[:, 0:H]                                     # dropout identity
        z1 = jnp.tanh(mz[:, H:3 * H])

        # output head in log space
        logits = dot(e_t, w_out) + b_out                     # (Bp, O)
        m2 = jnp.max(logits, axis=-1, keepdims=True)
        e2 = jnp.exp(logits - m2)
        log_o = (logits - m2) - jnp.log(jnp.sum(e2, axis=-1, keepdims=True))

        z2 = jnp.tanh(dot(z1, w_z2) + b_z2)                  # (Bp, H)
        u = dot(z2, w_z3) + b_z3                             # (Bp, 1)  z_t = sigmoid(u)
        sp = jnp.log(1.0 + jnp.exp(-jnp.abs(u)))
        log_zt = jnp.minimum(u, 0.0) - sp                    # log sigmoid(u)
        log_1mzt = jnp.minimum(-u, 0.0) - sp                 # log (1 - sigmoid(u))

        pt_o = log_o + log_1mzt                              # (Bp, O)
        pt_a = log_attn + log_zt                             # (Bp, LC)

        # single lane-dense packed output store:  h | c | p_t | zero-pad
        pieces = [h, c, pt_o, pt_a]
        if zero_pad is not None:
            pieces.append(zero_pad)
        slab_ref[tc] = jnp.concatenate(pieces, axis=1)

    # carry state to the next chunk
    h_scr[...] = h
    c_scr[...] = c


def attn_decoder_forward(pk, input_ids, hidden, c, annot_vector, answer_encoding,
                         input_d):
    """Mirrors AttnDecoderRNN.forward.

    input_ids may be (B,) -> single step with exactly the module's shapes
    (output (B,1,H), hidden (1,B,H), c (1,B,H), p_t (B, O+LC)), or (T,B) ->
    fused T-step decode (output (B,T,H), final hidden/c, p_t (T,B,O+LC)).
    """
    H = pk["hidden_size"]
    E = pk["embedding_dim"]
    O = pk["output_size"]

    input_ids = jnp.asarray(input_ids)
    single_step = input_ids.ndim == 1
    ids = input_ids[None, :] if single_step else input_ids      # (T, B)
    T, B = ids.shape
    LC = annot_vector.shape[1]
    Bp = ((B + 7) // 8) * 8                                     # pad batch to 8 sublanes
    padB = Bp - B

    # --- embedding lookup glue (data-dependent table switch) --------------------
    # TODO(synk): could move in-kernel via scalar-prefetched ids + Element gather;
    # kept as a wrapper-side XLA gather.
    input_d = input_d.reshape(B, -1)
    LD = input_d.shape[1]
    is_doc = ids > 2003
    doc_pos = jnp.clip(ids - 2004, 0, LD - 1)
    doc_tok = jnp.take_along_axis(jnp.broadcast_to(input_d, (T, B, LD)),
                                  doc_pos[..., None], axis=2)[..., 0]
    emb_w = pk["embedding_weight"]
    emb_w_d = pk["embedding_weight_d"]
    emb_norm = emb_w[jnp.clip(ids, 0, emb_w.shape[0] - 1)]
    emb_doc = emb_w_d[jnp.clip(doc_tok, 0, emb_w_d.shape[0] - 1)]
    embedded = jnp.where(is_doc[..., None], emb_doc, emb_norm).astype(jnp.float32)

    hidden2 = hidden.reshape(B, H).astype(jnp.float32)           # dropout == identity
    ans2 = answer_encoding.reshape(B, H).astype(jnp.float32)
    annot = annot_vector.astype(jnp.float32)
    annot_flat = annot.reshape(B, LC * H)
    if c is not None:
        h0, c0 = hidden2, c.reshape(B, H).astype(jnp.float32)
    else:
        h0 = jnp.zeros((B, H), jnp.float32)
        c0 = jnp.zeros((B, H), jnp.float32)

    # --- step-invariant partial products, computed ONCE per call ----------------
    attn_const = ans2 @ pk["wa_ans_f"] + annot_flat @ pk["wa_ann_f"] + pk["attn_b"]  # (B,LC)
    attn_hid0 = hidden2 @ pk["wa_hid_f"]                                             # (B,LC)
    gm_const = ans2 @ pk["w_ans_gm"] + pk["b_gm"]                                    # (B,7H)

    pad2 = lambda x: jnp.pad(x, ((0, padB), (0, 0)))
    hc0 = jnp.stack([pad2(h0), pad2(c0)], axis=0)                    # (2, Bp, H)
    attn_consts = jnp.stack([pad2(attn_const), pad2(attn_hid0)], 0)  # (2, Bp, LC)
    gm_const_p = pad2(gm_const)                                      # (Bp, 7H)
    annot_p = jnp.pad(annot, ((0, padB), (0, 0), (0, 0)))            # (Bp, LC, H)

    # --- chunked recurrence: grid over chunks, unrolled TC-step loop inside -----
    TC = min(T, 8)
    num_chunks = -(-T // TC)
    T_pad = num_chunks * TC
    embedded_p = jnp.pad(embedded, ((0, T_pad - T), (0, padB), (0, 0)))  # (T_pad,Bp,E)

    SLAB = ((2 * H + O + LC + 127) // 128) * 128

    def const(shape):
        return pl.BlockSpec(shape, lambda n, _k=len(shape): (0,) * _k)

    in_specs = [
        pl.BlockSpec((TC, Bp, E), lambda n: (n, 0, 0)),   # embedded, per chunk
        const((Bp, LC, H)),
        const((2, Bp, H)),
        const((2, Bp, LC)),
        const((Bp, 7 * H)),
        const((E, 7 * H + LC)),
        const((H, 4 * H + LC)),
        const((H, 7 * H)),
        const((H, 3 * H)),
        const((H, O)),
        const((2 * H, H)),
        const((H, 1)),
        const((1, O + H + 1)),
    ]
    out_specs = pl.BlockSpec((TC, Bp, SLAB), lambda n: (n, 0, 0))

    grid_spec = pltpu.PrefetchScalarGridSpec(
        num_scalar_prefetch=0,
        grid=(num_chunks,),
        in_specs=in_specs,
        out_specs=out_specs,
        scratch_shapes=[pltpu.VMEM((Bp, H), jnp.float32),
                        pltpu.VMEM((Bp, H), jnp.float32)],
    )

    slab = pl.pallas_call(
        attn_decoder_kernel,
        out_shape=jax.ShapeDtypeStruct((T_pad, Bp, SLAB), jnp.float32),
        grid_spec=grid_spec,
        compiler_params=pltpu.CompilerParams(dimension_semantics=("arbitrary",)),
    )(embedded_p, annot_p, hc0, attn_consts, gm_const_p,
      pk["w_emb"], pk["w_h"], pk["w_ct"], pk["w_hn"],
      pk["w_out"], pk["w_z2"], pk["w_z3"], pk["bias_pack"])

    # unpack lane-dense slab (free XLA slices on HBM)
    h_seq = slab[:T, :B, 0:H]                         # (T, B, H)
    c_seq = slab[:T, :B, H:2 * H]                     # (T, B, H)
    p_seq = slab[:T, :B, 2 * H:2 * H + O + LC]        # (T, B, O+LC)

    output = jnp.transpose(h_seq, (1, 0, 2))          # (B, T, H); T=1 -> (B,1,H)
    hidden_new = h_seq[-1][None]                      # (1, B, H)
    c_new = c_seq[-1][None]                           # (1, B, H)
    p_t = p_seq[0] if single_step else p_seq
    return output, hidden_new, c_new, p_t


def init_params(key, hidden_size, output_size, embedding_dim, len_c,
                vocab_size, doc_vocab_size):
    """Deterministic synthetic parameters with the same shapes as the module."""
    def linear(k, fan_in, fan_out):
        k1, k2 = jax.random.split(k)
        bound = 1.0 / jnp.sqrt(fan_in)
        wT = jax.random.uniform(k1, (fan_in, fan_out), jnp.float32, -bound, bound)
        b = jax.random.uniform(k2, (1, fan_out), jnp.float32, -bound, bound)
        return wT, b

    keys = jax.random.split(key, 12)
    H, E, O, LC = hidden_size, embedding_dim, output_size, len_c

    attn_wT, attn_b = linear(keys[0], H * (LC + 2) + E, LC)
    w_ihT, b_ih = linear(keys[1], 2 * H + E, 4 * H)
    w_hhT, b_hh = linear(keys[2], H, 4 * H)
    mlp_wT, mlp_b = linear(keys[3], 3 * H + E, H)
    out_wT, out_b = linear(keys[4], H, O)
    z1_wT, z1_b = linear(keys[5], 3 * H + E, 2 * H)
    z2_wT, z2_b = linear(keys[6], 2 * H, H)
    z3_wT, z3_b = linear(keys[7], H, 1)

    embedding_weight = jax.random.normal(keys[8], (vocab_size, E), jnp.float32)
    embedding_weight_d = jax.random.normal(keys[9], (doc_vocab_size, E), jnp.float32)

    # TODO(synk): attn_combine, L and Wb_0 are unused in forward() and omitted.
    return dict(
        hidden_size=H, embedding_dim=E, output_size=O,
        embedding_weight=embedding_weight, embedding_weight_d=embedding_weight_d,
        attn_wT=attn_wT, attn_b=attn_b,
        w_ihT=w_ihT, w_hhT=w_hhT, b_lstm=b_ih + b_hh,
        mlp_wT=mlp_wT, mlp_b=mlp_b,
        out_wT=out_wT, out_b=out_b,
        z1_wT=z1_wT, z1_b=z1_b, z2_wT=z2_wT, z2_b=z2_b, z3_wT=z3_wT, z3_b=z3_b,
    )


def pack_params(p):
    """Split / column-pack the torch-shaped weights into the kernel layout."""
    H, E, O = p["hidden_size"], p["embedding_dim"], p["output_size"]

    attn_wT = p["attn_wT"]              # rows in cat order [hid, emb, ans, annot_flat]
    wa_hid = attn_wT[0:H]
    wa_emb = attn_wT[H:H + E]
    wa_ans = attn_wT[H + E:2 * H + E]
    wa_ann = attn_wT[2 * H + E:]

    w_ihT = p["w_ihT"]                  # rows in cat order [c_t, ans, emb]; cols [i|f|g|o]
    wi_ct = w_ihT[0:H]
    wi_ans = w_ihT[H:2 * H]
    wi_emb = w_ihT[2 * H:2 * H + E]

    wmz = jnp.concatenate([p["mlp_wT"], p["z1_wT"]], axis=1)   # (3H+E, 3H) cols [e_t|z1]
    wmz_h, wmz_ct = wmz[0:H], wmz[H:2 * H]
    wmz_ans, wmz_emb = wmz[2 * H:3 * H], wmz[3 * H:3 * H + E]

    bf = jnp.bfloat16
    return dict(
        hidden_size=H, embedding_dim=E, output_size=O,
        embedding_weight=p["embedding_weight"],
        embedding_weight_d=p["embedding_weight_d"],
        # bf16 MXU weights, column-packed per shared LHS: [gates(4H) | mz(3H) | attn(LC)]
        w_emb=jnp.concatenate([wi_emb, wmz_emb, wa_emb], axis=1).astype(bf),   # (E, 7H+LC)
        w_h=jnp.concatenate([p["w_hhT"], wa_hid], axis=1).astype(bf),          # (H, 4H+LC)
        w_ct=jnp.concatenate([wi_ct, wmz_ct], axis=1).astype(bf),              # (H, 7H)
        w_hn=wmz_h.astype(bf),                                                 # (H, 3H)
        w_out=p["out_wT"].astype(bf),
        w_z2=p["z2_wT"].astype(bf),
        w_z3=p["z3_wT"].astype(bf),
        bias_pack=jnp.concatenate([p["out_b"], p["z2_b"], p["z3_b"]], axis=1), # (1, O+H+1)
        # f32 pieces used only for the once-per-call wrapper precompute
        wa_hid_f=wa_hid, wa_ans_f=wa_ans, wa_ann_f=wa_ann, attn_b=p["attn_b"],
        w_ans_gm=jnp.concatenate([wi_ans, wmz_ans], axis=1),                   # (H, 7H)
        b_gm=jnp.concatenate([p["b_lstm"], p["mlp_b"], p["z1_b"]], axis=1),    # (1, 7H)
    )


def reference_forward(params, input_ids, hidden, c, annot, ans_enc, input_d):
    """Pure-JAX mirror of the PyTorch forward (single step), monolithic f32 weights."""
    B = input_ids.shape[0]
    H = params["hidden_size"]
    LC = annot.shape[1]
    emb_w, emb_w_d = params["embedding_weight"], params["embedding_weight_d"]
    input_d = input_d.reshape(B, -1)
    is_doc = input_ids > 2003
    doc_pos = jnp.clip(input_ids - 2004, 0, input_d.shape[1] - 1)
    doc_tok = jnp.take_along_axis(input_d, doc_pos[:, None], axis=1)[:, 0]
    embedded = jnp.where(is_doc[:, None],
                         emb_w_d[jnp.clip(doc_tok, 0, emb_w_d.shape[0] - 1)],
                         emb_w[jnp.clip(input_ids, 0, emb_w.shape[0] - 1)])
    hid = hidden.reshape(B, H)
    ansv = ans_enc.reshape(B, H)
    in_attn = jnp.concatenate([hid, embedded, ansv, annot.reshape(B, LC * H)], 1)
    attn_w = jax.nn.softmax(jnp.tanh(in_attn @ params["attn_wT"] + params["attn_b"]), axis=1)
    c_t = jnp.einsum('bl,blh->bh', attn_w, annot)
    v_t = jnp.concatenate([c_t, ansv], 1)
    lstm_in = jnp.concatenate([v_t, embedded], 1)
    h0 = hid if c is not None else jnp.zeros((B, H), jnp.float32)
    c0 = c.reshape(B, H) if c is not None else jnp.zeros((B, H), jnp.float32)
    gates = lstm_in @ params["w_ihT"] + h0 @ params["w_hhT"] + params["b_lstm"]
    i = jax.nn.sigmoid(gates[:, :H]); f = jax.nn.sigmoid(gates[:, H:2 * H])
    g = jnp.tanh(gates[:, 2 * H:3 * H]); o = jax.nn.sigmoid(gates[:, 3 * H:])
    c_new = f * c0 + i * g
    h_new = o * jnp.tanh(c_new)
    input_mlp = jnp.concatenate([h_new, v_t, embedded], 1)
    e_t = input_mlp @ params["mlp_wT"] + params["mlp_b"]
    o_t = jax.nn.softmax(e_t @ params["out_wT"] + params["out_b"], axis=1)
    z = jnp.tanh(input_mlp @ params["z1_wT"] + params["z1_b"])
    z = jnp.tanh(z @ params["z2_wT"] + params["z2_b"])
    z_t = jax.nn.sigmoid(z @ params["z3_wT"] + params["z3_b"])
    p_t = jnp.log(jnp.concatenate([o_t * (1 - z_t), attn_w * z_t], 1) + 1e-20)
    return h_new.reshape(B, 1, H), h_new.reshape(1, B, H), c_new.reshape(1, B, H), p_t


if __name__ == "__main__":
    B, H, E, LC, O = 4, 32, 16, 8, 12
    V, VD, LD = 2004, 16, 10

    key = jax.random.PRNGKey(0)
    k_params, k_hid, k_cell, k_annot, k_ans, k_ind = jax.random.split(key, 6)

    params = init_params(k_params, H, O, E, LC, V, VD)
    packed = pack_params(params)

    # token ids: two from the base vocab, two "document" ids (> 2003)
    input_ids = jnp.array([5, 2006, 100, 2010], dtype=jnp.int32)
    input_d = jax.random.randint(k_ind, (B, LD), 0, VD, dtype=jnp.int32)
    hidden = jax.random.normal(k_hid, (1, B, H), jnp.float32)
    cell = jax.random.normal(k_cell, (1, B, H), jnp.float32)
    annot_vector = jax.random.normal(k_annot, (B, LC, H), jnp.float32)
    answer_encoding = jax.random.normal(k_ans, (B, 1, H), jnp.float32)

    fwd = jax.jit(functools.partial(attn_decoder_forward, packed))

    # --- single step (c provided): exactly the module's forward() --------------
    output, hidden_new, cell_new, p_t = fwd(
        input_ids, hidden, cell, annot_vector, answer_encoding, input_d)
    jax.block_until_ready((output, hidden_new, cell_new, p_t))
    assert output.shape == (B, 1, H)
    assert hidden_new.shape == (1, B, H)
    assert cell_new.shape == (1, B, H)
    assert p_t.shape == (B, O + LC)
    assert bool(jnp.all(jnp.isfinite(p_t)))

    ref_out, ref_hid, ref_cell, ref_pt = reference_forward(
        params, input_ids, hidden, cell, annot_vector, answer_encoding, input_d)
    assert float(jnp.max(jnp.abs(output - ref_out))) < 5e-2
    assert float(jnp.max(jnp.abs(hidden_new - ref_hid))) < 5e-2
    assert float(jnp.max(jnp.abs(cell_new - ref_cell))) < 5e-2
    assert float(jnp.max(jnp.abs(p_t - ref_pt))) < 5e-2

    # --- single step with c=None (zero LSTM state, attention uses input hidden) -
    out_n, hid_n, cell_n, pt_n = fwd(
        input_ids, hidden, None, annot_vector, answer_encoding, input_d)
    jax.block_until_ready(pt_n)
    _, r_hid_n, r_cell_n, r_pt_n = reference_forward(
        params, input_ids, hidden, None, annot_vector, answer_encoding, input_d)
    assert float(jnp.max(jnp.abs(hid_n - r_hid_n))) < 5e-2
    assert float(jnp.max(jnp.abs(cell_n - r_cell_n))) < 5e-2
    assert float(jnp.max(jnp.abs(pt_n - r_pt_n))) < 5e-2

    # --- fused 4-step decode: one pallas_call, checked vs sequential reference --
    T = 4
    ids_seq = jnp.array([[5, 2006, 100, 2010],
                         [7, 9, 2005, 3],
                         [2004, 11, 13, 2012],
                         [1, 2, 3, 4]], dtype=jnp.int32)
    out_seq, hid_T, cell_T, pt_seq = fwd(
        ids_seq, hidden, cell, annot_vector, answer_encoding, input_d)
    jax.block_until_ready((out_seq, hid_T, cell_T, pt_seq))
    assert out_seq.shape == (B, T, H)
    assert hid_T.shape == (1, B, H)
    assert cell_T.shape == (1, B, H)
    assert pt_seq.shape == (T, B, O + LC)
    assert bool(jnp.all(jnp.isfinite(pt_seq)))

    r_hid, r_cell = hidden, cell
    r_pts, r_hs = [], []
    for t in range(T):
        r_o, r_hid, r_cell, r_pt = reference_forward(
            params, ids_seq[t], r_hid, r_cell, annot_vector, answer_encoding, input_d)
        r_pts.append(r_pt)
        r_hs.append(r_o[:, 0])
    assert float(jnp.max(jnp.abs(pt_seq - jnp.stack(r_pts)))) < 5e-2
    assert float(jnp.max(jnp.abs(out_seq - jnp.stack(r_hs, axis=1)))) < 5e-2
    assert float(jnp.max(jnp.abs(hid_T - r_hid))) < 5e-2
    assert float(jnp.max(jnp.abs(cell_T - r_cell))) < 5e-2

    print("KERNEL_OK")
</pallas_src>

<mosaic_0001>
module attributes {stable_mosaic.version = 11 : i64} {
  func.func @attn_decoder_kernel(%arg0: i32, %arg1: memref<1x8x16xf32, #tpu.memory_space<vmem>>, %arg2: memref<8x8x32xf32, #tpu.memory_space<vmem>>, %arg3: memref<2x8x32xf32, #tpu.memory_space<vmem>>, %arg4: memref<2x8x8xf32, #tpu.memory_space<vmem>>, %arg5: memref<8x224xf32, #tpu.memory_space<vmem>>, %arg6: memref<16x232xbf16, #tpu.memory_space<vmem>>, %arg7: memref<32x136xbf16, #tpu.memory_space<vmem>>, %arg8: memref<32x224xbf16, #tpu.memory_space<vmem>>, %arg9: memref<32x96xbf16, #tpu.memory_space<vmem>>, %arg10: memref<32x12xbf16, #tpu.memory_space<vmem>>, %arg11: memref<64x32xbf16, #tpu.memory_space<vmem>>, %arg12: memref<32x1xbf16, #tpu.memory_space<vmem>>, %arg13: memref<1x45xf32, #tpu.memory_space<vmem>>, %arg14: memref<1x8x128xf32, #tpu.memory_space<vmem>>, %arg15: memref<8x32xf32, #tpu.memory_space<vmem>>, %arg16: memref<8x32xf32, #tpu.memory_space<vmem>>) attributes {dimension_semantics = [#tpu.dimension_semantics<arbitrary>], iteration_bounds = array<i64: 1>, scalar_prefetch = 0 : i64, scratch_operands = 2 : i64, tpu.core_type = #tpu.core_type<tc>, window_params = [{transform_indices = @transform_0, window_bounds = array<i64: 1, 8, 16>}, {pipeline_mode = #tpu.pipeline_mode<synchronous>, transform_indices = @transform_1, window_bounds = array<i64: 8, 8, 32>}, {pipeline_mode = #tpu.pipeline_mode<synchronous>, transform_indices = @transform_2, window_bounds = array<i64: 2, 8, 32>}, {pipeline_mode = #tpu.pipeline_mode<synchronous>, transform_indices = @transform_3, window_bounds = array<i64: 2, 8, 8>}, {pipeline_mode = #tpu.pipeline_mode<synchronous>, transform_indices = @transform_4, window_bounds = array<i64: 8, 224>}, {pipeline_mode = #tpu.pipeline_mode<synchronous>, transform_indices = @transform_5, window_bounds = array<i64: 16, 232>}, {pipeline_mode = #tpu.pipeline_mode<synchronous>, transform_indices = @transform_6, window_bounds = array<i64: 32, 136>}, {pipeline_mode = #tpu.pipeline_mode<synchronous>, transform_indices = @transform_7, window_bounds = array<i64: 32, 224>}, {pipeline_mode = #tpu.pipeline_mode<synchronous>, transform_indices = @transform_8, window_bounds = array<i64: 32, 96>}, {pipeline_mode = #tpu.pipeline_mode<synchronous>, transform_indices = @transform_9, window_bounds = array<i64: 32, 12>}, {pipeline_mode = #tpu.pipeline_mode<synchronous>, transform_indices = @transform_10, window_bounds = array<i64: 64, 32>}, {pipeline_mode = #tpu.pipeline_mode<synchronous>, transform_indices = @transform_11, window_bounds = array<i64: 32, 1>}, {pipeline_mode = #tpu.pipeline_mode<synchronous>, transform_indices = @transform_12, window_bounds = array<i64: 1, 45>}, {transform_indices = @transform_13, window_bounds = array<i64: 1, 8, 128>}]} {
    %c0_i32 = arith.constant 0 : i32
    %0 = arith.cmpi eq, %arg0, %c0_i32 : i32
    %1 = arith.extui %0 : i1 to i32
    %c0_i32_0 = arith.constant 0 : i32
    %2 = arith.cmpi ne, %1, %c0_i32_0 : i32
    scf.if %2 {
      %c0_62 = arith.constant 0 : index
      %c0_63 = arith.constant 0 : index
      %c0_64 = arith.constant 0 : index
      %148 = vector.load %arg3[%c0_62, %c0_63, %c0_64] : memref<2x8x32xf32, #tpu.memory_space<vmem>>, vector<1x8x32xf32>
      %149 = vector.shape_cast %148 : vector<1x8x32xf32> to vector<8x32xf32>
      %c0_65 = arith.constant 0 : index
      %c0_66 = arith.constant 0 : index
      %150 = vector.load %arg15[%c0_65, %c0_66] : memref<8x32xf32, #tpu.memory_space<vmem>>, vector<8x32xf32>
      tpu.vector_store %arg15[%c0_65, %c0_66], %149 {strides = array<i32>} : memref<8x32xf32, #tpu.memory_space<vmem>>, vector<8x32xf32>,
      %c1_67 = arith.constant 1 : index
      %c0_68 = arith.constant 0 : index
      %c0_69 = arith.constant 0 : index
      %151 = vector.load %arg3[%c1_67, %c0_68, %c0_69] : memref<2x8x32xf32, #tpu.memory_space<vmem>>, vector<1x8x32xf32>
      %152 = vector.shape_cast %151 : vector<1x8x32xf32> to vector<8x32xf32>
      %c0_70 = arith.constant 0 : index
      %c0_71 = arith.constant 0 : index
      %153 = vector.load %arg16[%c0_70, %c0_71] : memref<8x32xf32, #tpu.memory_space<vmem>>, vector<8x32xf32>
      tpu.vector_store %arg16[%c0_70, %c0_71], %152 {strides = array<i32>} : memref<8x32xf32, #tpu.memory_space<vmem>>, vector<8x32xf32>,
    } else {
    }
    %c0 = arith.constant 0 : index
    %c0_1 = arith.constant 0 : index
    %c0_2 = arith.constant 0 : index
    %3 = vector.load %arg2[%c0, %c0_1, %c0_2] : memref<8x8x32xf32, #tpu.memory_space<vmem>>, vector<8x8x32xf32>
    %c0_3 = arith.constant 0 : index
    %c0_4 = arith.constant 0 : index
    %c0_5 = arith.constant 0 : index
    %4 = vector.load %arg4[%c0_3, %c0_4, %c0_5] : memref<2x8x8xf32, #tpu.memory_space<vmem>>, vector<1x8x8xf32>
    %5 = vector.shape_cast %4 : vector<1x8x8xf32> to vector<8x8xf32>
    %c1 = arith.constant 1 : index
    %c0_6 = arith.constant 0 : index
    %c0_7 = arith.constant 0 : index
    %6 = vector.load %arg4[%c1, %c0_6, %c0_7] : memref<2x8x8xf32, #tpu.memory_space<vmem>>, vector<1x8x8xf32>
    %7 = vector.shape_cast %6 : vector<1x8x8xf32> to vector<8x8xf32>
    %c0_8 = arith.constant 0 : index
    %c0_9 = arith.constant 0 : index
    %8 = vector.load %arg5[%c0_8, %c0_9] : memref<8x224xf32, #tpu.memory_space<vmem>>, vector<8x224xf32>
    %c0_10 = arith.constant 0 : index
    %c0_11 = arith.constant 0 : index
    %9 = vector.load %arg6[%c0_10, %c0_11] : memref<16x232xbf16, #tpu.memory_space<vmem>>, vector<16x232xbf16>
    %c0_12 = arith.constant 0 : index
    %c0_13 = arith.constant 0 : index
    %10 = vector.load %arg7[%c0_12, %c0_13] : memref<32x136xbf16, #tpu.memory_space<vmem>>, vector<32x136xbf16>
    %c0_14 = arith.constant 0 : index
    %c0_15 = arith.constant 0 : index
    %11 = vector.load %arg8[%c0_14, %c0_15] : memref<32x224xbf16, #tpu.memory_space<vmem>>, vector<32x224xbf16>
    %c0_16 = arith.constant 0 : index
    %c0_17 = arith.constant 0 : index
    %12 = vector.load %arg9[%c0_16, %c0_17] : memref<32x96xbf16, #tpu.memory_space<vmem>>, vector<32x96xbf16>
    %c0_18 = arith.constant 0 : index
    %c0_19 = arith.constant 0 : index
    %13 = vector.load %arg10[%c0_18, %c0_19] : memref<32x12xbf16, #tpu.memory_space<vmem>>, vector<32x12xbf16>
    %c0_20 = arith.constant 0 : index
    %c0_21 = arith.constant 0 : index
    %14 = vector.load %arg11[%c0_20, %c0_21] : memref<64x32xbf16, #tpu.memory_space<vmem>>, vector<64x32xbf16>
    %c0_22 = arith.constant 0 : index
    %c0_23 = arith.constant 0 : index
    %15 = vector.load %arg12[%c0_22, %c0_23] : memref<32x1xbf16, #tpu.memory_space<vmem>>, vector<32x1xbf16>
    %c0_24 = arith.constant 0 : index
    %c0_25 = arith.constant 0 : index
    %16 = vector.load %arg13[%c0_24, %c0_25] : memref<1x45xf32, #tpu.memory_space<vmem>>, vector<1x12xf32>
    %c0_26 = arith.constant 0 : index
    %c12 = arith.constant 12 : index
    %17 = vector.load %arg13[%c0_26, %c12] : memref<1x45xf32, #tpu.memory_space<vmem>>, vector<1x32xf32>
    %c0_27 = arith.constant 0 : index
    %c44 = arith.constant 44 : index
    %18 = vector.load %arg13[%c0_27, %c44] : memref<1x45xf32, #tpu.memory_space<vmem>>, vector<1x1xf32>
    %cst = arith.constant 0.000000e+00 : f32
    %19 = vector.broadcast %cst : f32 to vector<8x44xf32>
    %c0_28 = arith.constant 0 : index
    %c0_29 = arith.constant 0 : index
    %20 = vector.load %arg15[%c0_28, %c0_29] : memref<8x32xf32, #tpu.memory_space<vmem>>, vector<8x32xf32>
    %c0_30 = arith.constant 0 : index
    %c0_31 = arith.constant 0 : index
    %21 = vector.load %arg16[%c0_30, %c0_31] : memref<8x32xf32, #tpu.memory_space<vmem>>, vector<8x32xf32>
    %c0_32 = arith.constant 0 : index
    %c0_33 = arith.constant 0 : index
    %c0_34 = arith.constant 0 : index
    %22 = vector.load %arg1[%c0_32, %c0_33, %c0_34] : memref<1x8x16xf32, #tpu.memory_space<vmem>>, vector<1x8x16xf32>
    %23 = vector.shape_cast %22 : vector<1x8x16xf32> to vector<8x16xf32>
    %24 = arith.truncf %23 : vector<8x16xf32> to vector<8x16xbf16>
    %cst_35 = arith.constant dense<0.000000e+00> : vector<8x232xf32>
    %25 = tpu.matmul %24, %9, %cst_35 {dimension_numbers = #tpu.dot_dimension_numbers<[1], [0], [0], [1], [0, 0, 1, 1], [], []>} : vector<8x16xbf16>, vector<16x232xbf16>, vector<8x232xf32> -> vector<8x232xf32>
    %26 = arith.truncf %20 : vector<8x32xf32> to vector<8x32xbf16>
    %cst_36 = arith.constant dense<0.000000e+00> : vector<8x136xf32>
    %27 = tpu.matmul %26, %10, %cst_36 {dimension_numbers = #tpu.dot_dimension_numbers<[1], [0], [0], [1], [0, 0, 1, 1], [], []>} : vector<8x32xbf16>, vector<32x136xbf16>, vector<8x136xf32> -> vector<8x136xf32>
    %28 = vector.extract_strided_slice %27 {offsets = [0, 128], sizes = [8, 8], strides = [1, 1]} : vector<8x136xf32> to vector<8x8xf32>
    %29 = arith.extui %0 : i1 to i32
    %30 = arith.sitofp %29 : i32 to f32
    %31 = arith.subf %7, %28 : vector<8x8xf32>
    %32 = vector.broadcast %30 : f32 to vector<8x8xf32>
    %33 = arith.mulf %31, %32 : vector<8x8xf32>
    %34 = arith.addf %28, %33 : vector<8x8xf32>
    %35 = vector.extract_strided_slice %25 {offsets = [0, 224], sizes = [8, 8], strides = [1, 1]} : vector<8x232xf32> to vector<8x8xf32>
    %36 = arith.addf %35, %34 : vector<8x8xf32>
    %37 = arith.addf %36, %5 : vector<8x8xf32>
    %38 = math.tanh %37 : vector<8x8xf32>
    %cst_37 = arith.constant dense<0xFF800000> : vector<8xf32>
    %39 = vector.multi_reduction <maximumf>, %38, %cst_37 [1] : vector<8x8xf32> to vector<8xf32>
    %40 = vector.shape_cast %39 : vector<8xf32> to vector<8x1xf32>
    %41 = vector.broadcast %40 : vector<8x1xf32> to vector<8x8xf32>
    %42 = arith.subf %38, %41 : vector<8x8xf32>
    %43 = math.exp %42 : vector<8x8xf32>
    %cst_38 = arith.constant dense<0.000000e+00> : vector<8xf32>
    %44 = vector.multi_reduction <add>, %43, %cst_38 [1] : vector<8x8xf32> to vector<8xf32>
    %45 = vector.shape_cast %44 : vector<8xf32> to vector<8x1xf32>
    %46 = tpu.reciprocal %45 {approx = true} : vector<8x1xf32> -> vector<8x1xf32>
    %47 = vector.broadcast %46 : vector<8x1xf32> to vector<8x8xf32>
    %48 = arith.mulf %43, %47 : vector<8x8xf32>
    %49 = vector.broadcast %40 : vector<8x1xf32> to vector<8x8xf32>
    %50 = arith.subf %38, %49 : vector<8x8xf32>
    %51 = math.log %45 : vector<8x1xf32>
    %52 = vector.broadcast %51 : vector<8x1xf32> to vector<8x8xf32>
    %53 = arith.subf %50, %52 : vector<8x8xf32>
    %54 = vector.shape_cast %48 : vector<8x8xf32> to vector<8x8x1xf32>
    %55 = vector.broadcast %54 : vector<8x8x1xf32> to vector<8x8x32xf32>
    %56 = arith.mulf %55, %3 : vector<8x8x32xf32>
    %cst_39 = arith.constant dense<0.000000e+00> : vector<8x32xf32>
    %57 = vector.multi_reduction <add>, %56, %cst_39 [1] : vector<8x8x32xf32> to vector<8x32xf32>
    %58 = vector.extract_strided_slice %25 {offsets = [0, 0], sizes = [8, 224], strides = [1, 1]} : vector<8x232xf32> to vector<8x224xf32>
    %59 = arith.truncf %57 : vector<8x32xf32> to vector<8x32xbf16>
    %cst_40 = arith.constant dense<0.000000e+00> : vector<8x224xf32>
    %60 = tpu.matmul %59, %11, %cst_40 {dimension_numbers = #tpu.dot_dimension_numbers<[1], [0], [0], [1], [0, 0, 1, 1], [], []>} : vector<8x32xbf16>, vector<32x224xbf16>, vector<8x224xf32> -> vector<8x224xf32>
    %61 = arith.addf %58, %60 : vector<8x224xf32>
    %62 = arith.addf %61, %8 : vector<8x224xf32>
    %63 = vector.extract_strided_slice %62 {offsets = [0, 0], sizes = [8, 128], strides = [1, 1]} : vector<8x224xf32> to vector<8x128xf32>
    %64 = vector.extract_strided_slice %27 {offsets = [0, 0], sizes = [8, 128], strides = [1, 1]} : vector<8x136xf32> to vector<8x128xf32>
    %65 = arith.addf %63, %64 : vector<8x128xf32>
    %66 = vector.extract_strided_slice %65 {offsets = [0, 0], sizes = [8, 32], strides = [1, 1]} : vector<8x128xf32> to vector<8x32xf32>
    %67 = arith.negf %66 : vector<8x32xf32>
    %68 = math.exp %67 : vector<8x32xf32>
    %cst_41 = arith.constant 1.000000e+00 : f32
    %69 = vector.broadcast %cst_41 : f32 to vector<8x32xf32>
    %70 = arith.addf %69, %68 : vector<8x32xf32>
    %71 = arith.divf %69, %70 : vector<8x32xf32>
    %72 = vector.extract_strided_slice %65 {offsets = [0, 32], sizes = [8, 32], strides = [1, 1]} : vector<8x128xf32> to vector<8x32xf32>
    %73 = arith.negf %72 : vector<8x32xf32>
    %74 = math.exp %73 : vector<8x32xf32>
    %cst_42 = arith.constant 1.000000e+00 : f32
    %75 = vector.broadcast %cst_42 : f32 to vector<8x32xf32>
    %76 = arith.addf %75, %74 : vector<8x32xf32>
    %77 = arith.divf %75, %76 : vector<8x32xf32>
    %78 = vector.extract_strided_slice %65 {offsets = [0, 64], sizes = [8, 32], strides = [1, 1]} : vector<8x128xf32> to vector<8x32xf32>
    %79 = math.tanh %78 : vector<8x32xf32>
    %80 = vector.extract_strided_slice %65 {offsets = [0, 96], sizes = [8, 32], strides = [1, 1]} : vector<8x128xf32> to vector<8x32xf32>
    %81 = arith.negf %80 : vector<8x32xf32>
    %82 = math.exp %81 : vector<8x32xf32>
    %cst_43 = arith.constant 1.000000e+00 : f32
    %83 = vector.broadcast %cst_43 : f32 to vector<8x32xf32>
    %84 = arith.addf %83, %82 : vector<8x32xf32>
    %85 = arith.divf %83, %84 : vector<8x32xf32>
    %86 = arith.mulf %77, %21 : vector<8x32xf32>
    %87 = arith.mulf %71, %79 : vector<8x32xf32>
    %88 = arith.addf %86, %87 : vector<8x32xf32>
    %89 = math.tanh %88 : vector<8x32xf32>
    %90 = arith.mulf %85, %89 : vector<8x32xf32>
    %91 = vector.extract_strided_slice %62 {offsets = [0, 128], sizes = [8, 96], strides = [1, 1]} : vector<8x224xf32> to vector<8x96xf32>
    %92 = arith.truncf %90 : vector<8x32xf32> to vector<8x32xbf16>
    %cst_44 = arith.constant dense<0.000000e+00> : vector<8x96xf32>
    %93 = tpu.matmul %92, %12, %cst_44 {dimension_numbers = #tpu.dot_dimension_numbers<[1], [0], [0], [1], [0, 0, 1, 1], [], []>} : vector<8x32xbf16>, vector<32x96xbf16>, vector<8x96xf32> -> vector<8x96xf32>
    %94 = arith.addf %91, %93 : vector<8x96xf32>
    %95 = vector.extract_strided_slice %94 {offsets = [0, 0], sizes = [8, 32], strides = [1, 1]} : vector<8x96xf32> to vector<8x32xf32>
    %96 = vector.extract_strided_slice %94 {offsets = [0, 32], sizes = [8, 64], strides = [1, 1]} : vector<8x96xf32> to vector<8x64xf32>
    %97 = math.tanh %96 : vector<8x64xf32>
    %98 = arith.truncf %95 : vector<8x32xf32> to vector<8x32xbf16>
    %cst_45 = arith.constant dense<0.000000e+00> : vector<8x12xf32>
    %99 = tpu.matmul %98, %13, %cst_45 {dimension_numbers = #tpu.dot_dimension_numbers<[1], [0], [0], [1], [0, 0, 1, 1], [], []>} : vector<8x32xbf16>, vector<32x12xbf16>, vector<8x12xf32> -> vector<8x12xf32>
    %100 = vector.broadcast %16 : vector<1x12xf32> to vector<8x12xf32>
    %101 = arith.addf %99, %100 : vector<8x12xf32>
    %cst_46 = arith.constant dense<0xFF800000> : vector<8xf32>
    %102 = vector.multi_reduction <maximumf>, %101, %cst_46 [1] : vector<8x12xf32> to vector<8xf32>
    %103 = vector.shape_cast %102 : vector<8xf32> to vector<8x1xf32>
    %104 = vector.broadcast %103 : vector<8x1xf32> to vector<8x12xf32>
    %105 = arith.subf %101, %104 : vector<8x12xf32>
    %106 = math.exp %105 : vector<8x12xf32>
    %107 = vector.broadcast %103 : vector<8x1xf32> to vector<8x12xf32>
    %108 = arith.subf %101, %107 : vector<8x12xf32>
    %cst_47 = arith.constant dense<0.000000e+00> : vector<8xf32>
    %109 = vector.multi_reduction <add>, %106, %cst_47 [1] : vector<8x12xf32> to vector<8xf32>
    %110 = vector.shape_cast %109 : vector<8xf32> to vector<8x1xf32>
    %111 = math.log %110 : vector<8x1xf32>
    %112 = vector.broadcast %111 : vector<8x1xf32> to vector<8x12xf32>
    %113 = arith.subf %108, %112 : vector<8x12xf32>
    %114 = arith.truncf %97 : vector<8x64xf32> to vector<8x64xbf16>
    %cst_48 = arith.constant dense<0.000000e+00> : vector<8x32xf32>
    %115 = tpu.matmul %114, %14, %cst_48 {dimension_numbers = #tpu.dot_dimension_numbers<[1], [0], [0], [1], [0, 0, 1, 1], [], []>} : vector<8x64xbf16>, vector<64x32xbf16>, vector<8x32xf32> -> vector<8x32xf32>
    %116 = vector.broadcast %17 : vector<1x32xf32> to vector<8x32xf32>
    %117 = arith.addf %115, %116 : vector<8x32xf32>
    %118 = math.tanh %117 : vector<8x32xf32>
    %119 = arith.truncf %118 : vector<8x32xf32> to vector<8x32xbf16>
    %cst_49 = arith.constant dense<0.000000e+00> : vector<8x1xf32>
    %120 = tpu.matmul %119, %15, %cst_49 {dimension_numbers = #tpu.dot_dimension_numbers<[1], [0], [0], [1], [0, 0, 1, 1], [], []>} : vector<8x32xbf16>, vector<32x1xbf16>, vector<8x1xf32> -> vector<8x1xf32>
    %121 = vector.broadcast %18 : vector<1x1xf32> to vector<8x1xf32>
    %122 = arith.addf %120, %121 : vector<8x1xf32>
    %123 = math.absf %122 : vector<8x1xf32>
    %cst_50 = arith.constant 0.000000e+00 : f32
    %124 = vector.broadcast %cst_50 : f32 to vector<8x1xf32>
    %125 = arith.subf %124, %123 : vector<8x1xf32>
    %126 = math.exp %125 : vector<8x1xf32>
    %cst_51 = arith.constant 1.000000e+00 : f32
    %127 = vector.broadcast %cst_51 : f32 to vector<8x1xf32>
    %128 = arith.addf %127, %126 : vector<8x1xf32>
    %129 = math.log %128 : vector<8x1xf32>
    %cst_52 = arith.constant 0.000000e+00 : f32
    %130 = vector.broadcast %cst_52 : f32 to vector<8x1xf32>
    %131 = arith.minimumf %122, %130 : vector<8x1xf32>
    %132 = arith.subf %131, %129 : vector<8x1xf32>
    %cst_53 = arith.constant 0.000000e+00 : f32
    %133 = vector.broadcast %cst_53 : f32 to vector<8x1xf32>
    %134 = arith.subf %133, %122 : vector<8x1xf32>
    %cst_54 = arith.constant 0.000000e+00 : f32
    %135 = vector.broadcast %cst_54 : f32 to vector<8x1xf32>
    %136 = arith.minimumf %134, %135 : vector<8x1xf32>
    %137 = arith.subf %136, %129 : vector<8x1xf32>
    %138 = vector.broadcast %137 : vector<8x1xf32> to vector<8x12xf32>
    %139 = arith.addf %113, %138 : vector<8x12xf32>
    %140 = vector.broadcast %132 : vector<8x1xf32> to vector<8x8xf32>
    %141 = arith.addf %53, %140 : vector<8x8xf32>
    %142 = tpu.concatenate %90, %88, %139, %141, %19 in 1 : vector<8x32xf32>, vector<8x32xf32>, vector<8x12xf32>, vector<8x8xf32>, vector<8x44xf32> -> vector<8x128xf32>
    %c0_55 = arith.constant 0 : index
    %c0_56 = arith.constant 0 : index
    %c0_57 = arith.constant 0 : index
    %143 = vector.load %arg14[%c0_55, %c0_56, %c0_57] : memref<1x8x128xf32, #tpu.memory_space<vmem>>, vector<1x8x128xf32>
    %144 = vector.shape_cast %143 : vector<1x8x128xf32> to vector<8x128xf32>
    %145 = vector.shape_cast %142 : vector<8x128xf32> to vector<1x8x128xf32>
    tpu.vector_store %arg14[%c0_55, %c0_56, %c0_57], %145 {strides = array<i32>} : memref<1x8x128xf32, #tpu.memory_space<vmem>>, vector<1x8x128xf32>,
    %c0_58 = arith.constant 0 : index
    %c0_59 = arith.constant 0 : index
    %146 = vector.load %arg15[%c0_58, %c0_59] : memref<8x32xf32, #tpu.memory_space<vmem>>, vector<8x32xf32>
    tpu.vector_store %arg15[%c0_58, %c0_59], %90 {strides = array<i32>} : memref<8x32xf32, #tpu.memory_space<vmem>>, vector<8x32xf32>,
    %c0_60 = arith.constant 0 : index
    %c0_61 = arith.constant 0 : index
    %147 = vector.load %arg16[%c0_60, %c0_61] : memref<8x32xf32, #tpu.memory_space<vmem>>, vector<8x32xf32>
    tpu.vector_store %arg16[%c0_60, %c0_61], %88 {strides = array<i32>} : memref<8x32xf32, #tpu.memory_space<vmem>>, vector<8x32xf32>,
    return
  }
  func.func @transform_0(%arg0: i32) -> (i32, i32, i32) {
    %c0_i32 = arith.constant 0 : i32
    %c0_i32_0 = arith.constant 0 : i32
    %c0_i32_1 = arith.constant 0 : i32
    return %arg0, %c0_i32, %c0_i32_0 : i32, i32, i32
  }
  func.func @transform_1(%arg0: i32) -> (i32, i32, i32) {
    %c0_i32 = arith.constant 0 : i32
    %c0_i32_0 = arith.constant 0 : i32
    %c0_i32_1 = arith.constant 0 : i32
    %c0_i32_2 = arith.constant 0 : i32
    return %c0_i32, %c0_i32_0, %c0_i32_1 : i32, i32, i32
  }
  func.func @transform_2(%arg0: i32) -> (i32, i32, i32) {
    %c0_i32 = arith.constant 0 : i32
    %c0_i32_0 = arith.constant 0 : i32
    %c0_i32_1 = arith.constant 0 : i32
    %c0_i32_2 = arith.constant 0 : i32
    return %c0_i32, %c0_i32_0, %c0_i32_1 : i32, i32, i32
  }
  func.func @transform_3(%arg0: i32) -> (i32, i32, i32) {
    %c0_i32 = arith.constant 0 : i32
    %c0_i32_0 = arith.constant 0 : i32
    %c0_i32_1 = arith.constant 0 : i32
    %c0_i32_2 = arith.constant 0 : i32
    return %c0_i32, %c0_i32_0, %c0_i32_1 : i32, i32, i32
  }
  func.func @transform_4(%arg0: i32) -> (i32, i32) {
    %c0_i32 = arith.constant 0 : i32
    %c0_i32_0 = arith.constant 0 : i32
    %c0_i32_1 = arith.constant 0 : i32
    return %c0_i32, %c0_i32_0 : i32, i32
  }
  func.func @transform_5(%arg0: i32) -> (i32, i32) {
    %c0_i32 = arith.constant 0 : i32
    %c0_i32_0 = arith.constant 0 : i32
    %c0_i32_1 = arith.constant 0 : i32
    return %c0_i32, %c0_i32_0 : i32, i32
  }
  func.func @transform_6(%arg0: i32) -> (i32, i32) {
    %c0_i32 = arith.constant 0 : i32
    %c0_i32_0 = arith.constant 0 : i32
    %c0_i32_1 = arith.constant 0 : i32
    return %c0_i32, %c0_i32_0 : i32, i32
  }
  func.func @transform_7(%arg0: i32) -> (i32, i32) {
    %c0_i32 = arith.constant 0 : i32
    %c0_i32_0 = arith.constant 0 : i32
    %c0_i32_1 = arith.constant 0 : i32
    return %c0_i32, %c0_i32_0 : i32, i32
  }
  func.func @transform_8(%arg0: i32) -> (i32, i32) {
    %c0_i32 = arith.constant 0 : i32
    %c0_i32_0 = arith.constant 0 : i32
    %c0_i32_1 = arith.constant 0 : i32
    return %c0_i32, %c0_i32_0 : i32, i32
  }
  func.func @transform_9(%arg0: i32) -> (i32, i32) {
    %c0_i32 = arith.constant 0 : i32
    %c0_i32_0 = arith.constant 0 : i32
    %c0_i32_1 = arith.constant 0 : i32
    return %c0_i32, %c0_i32_0 : i32, i32
  }
  func.func @transform_10(%arg0: i32) -> (i32, i32) {
    %c0_i32 = arith.constant 0 : i32
    %c0_i32_0 = arith.constant 0 : i32
    %c0_i32_1 = arith.constant 0 : i32
    return %c0_i32, %c0_i32_0 : i32, i32
  }
  func.func @transform_11(%arg0: i32) -> (i32, i32) {
    %c0_i32 = arith.constant 0 : i32
    %c0_i32_0 = arith.constant 0 : i32
    %c0_i32_1 = arith.constant 0 : i32
    return %c0_i32, %c0_i32_0 : i32, i32
  }
  func.func @transform_12(%arg0: i32) -> (i32, i32) {
    %c0_i32 = arith.constant 0 : i32
    %c0_i32_0 = arith.constant 0 : i32
    %c0_i32_1 = arith.constant 0 : i32
    return %c0_i32, %c0_i32_0 : i32, i32
  }
  func.func @transform_13(%arg0: i32) -> (i32, i32, i32) {
    %c0_i32 = arith.constant 0 : i32
    %c0_i32_0 = arith.constant 0 : i32
    %c0_i32_1 = arith.constant 0 : i32
    return %arg0, %c0_i32, %c0_i32_0 : i32, i32, i32
  }
}

</mosaic_0001>

<llo_original>
// kernel: attn_decoder_forward.1
$region0: #{attn_decoder_forward.1}
  #allocation0 [shape = 'u32[]', space=smem, size = 0x4, offset = 0x4, fixed_abs, tag = 'smem constant byte address 0x4 - core index']
  #allocation1 [shape = 'u32[72,128]{1,0:T(1,128)}', space=vmem, size = 0x9000, scoped, tag = 'internal scratch']
  #allocation2 [shape = 'f32[8,32]{1,0:T(8,128)}', space=vmem, size = 0x1000, scoped, tag = 'scratch operand']
  #allocation3 [shape = 'f32[8,32]{1,0:T(8,128)}', space=vmem, size = 0x1000, scoped, tag = 'scratch operand']
  %s0 = inlined_call_operand.vmem [shape: f32[1,8,16], index: 0, kind: input, shape index: {}]
  %s1 = inlined_call_operand.vmem [shape: f32[8,8,32], index: 1, kind: input, shape index: {}]
  %s2 = inlined_call_operand.vmem [shape: f32[2,8,32], index: 2, kind: input, shape index: {}]
  %s3 = inlined_call_operand.vmem [shape: f32[2,8,8], index: 3, kind: input, shape index: {}]
  %s4 = inlined_call_operand.vmem [shape: f32[8,224], index: 4, kind: input, shape index: {}]
  %s5 = inlined_call_operand.vmem [shape: bf16[16,232], index: 5, kind: input, shape index: {}]
  %s6 = inlined_call_operand.vmem [shape: bf16[32,136], index: 6, kind: input, shape index: {}]
  %s7 = inlined_call_operand.vmem [shape: bf16[32,224], index: 7, kind: input, shape index: {}]
  %s8 = inlined_call_operand.vmem [shape: bf16[32,96], index: 8, kind: input, shape index: {}]
  %s9 = inlined_call_operand.vmem [shape: bf16[32,12], index: 9, kind: input, shape index: {}]
  %s10 = inlined_call_operand.vmem [shape: bf16[64,32], index: 10, kind: input, shape index: {}]
  %s11 = inlined_call_operand.vmem [shape: bf16[32,1], index: 11, kind: input, shape index: {}]
  %s12 = inlined_call_operand.vmem [shape: f32[1,45], index: 12, kind: input, shape index: {}]
  %s13 = inlined_call_operand.vmem [shape: f32[1,8,128], index: 13, kind: output, shape index: {}]
  %s14 = sld [smem:[#allocation0]]
  $region66: #{attn_decoder_forward.1} parent=0
    _
  %s16 = ssub.s32 1, %s14
  %s17 = scalar_select 0, %s16, %s14
  // Predicated region
  $region2: #{attn_decoder_forward.1} parent=0 // pred_check
    _
  $region3: #{attn_decoder_forward.1} parent=0 // pred_check_branch
    %19 = sbr.rel (0) target = $region5
  $region4: #{attn_decoder_forward.1} parent=0 // pred_region
    _
  $region5: #{attn_decoder_forward.1} parent=0 // pred_fallthru
    _
  // Predicated region
  $region6: #{attn_decoder_forward.1} parent=0 // pred_check
    _
  $region7: #{attn_decoder_forward.1} parent=0 // pred_check_branch
    %21 = sbr.rel (0) target = $region9
  $region8: #{attn_decoder_forward.1} parent=0 // pred_region
    _
  $region9: #{attn_decoder_forward.1} parent=0 // pred_fallthru
    _
  // Predicated region
  $region10: #{attn_decoder_forward.1} parent=0 // pred_check
    _
  $region11: #{attn_decoder_forward.1} parent=0 // pred_check_branch
    %23 = sbr.rel (0) target = $region13
  $region12: #{attn_decoder_forward.1} parent=0 // pred_region
    _
  $region13: #{attn_decoder_forward.1} parent=0 // pred_fallthru
    _
  // Predicated region
  $region14: #{attn_decoder_forward.1} parent=0 // pred_check
    _
  $region15: #{attn_decoder_forward.1} parent=0 // pred_check_branch
    %25 = sbr.rel (0) target = $region17
  $region16: #{attn_decoder_forward.1} parent=0 // pred_region
    _
  $region17: #{attn_decoder_forward.1} parent=0 // pred_fallthru
    _
  // Predicated region
  $region18: #{attn_decoder_forward.1} parent=0 // pred_check
    _
  $region19: #{attn_decoder_forward.1} parent=0 // pred_check_branch
    %27 = sbr.rel (0) target = $region21
  $region20: #{attn_decoder_forward.1} parent=0 // pred_region
    _
  $region21: #{attn_decoder_forward.1} parent=0 // pred_fallthru
    _
  // Predicated region
  $region22: #{attn_decoder_forward.1} parent=0 // pred_check
    _
  $region23: #{attn_decoder_forward.1} parent=0 // pred_check_branch
    %29 = sbr.rel (0) target = $region25
  $region24: #{attn_decoder_forward.1} parent=0 // pred_region
    _
  $region25: #{attn_decoder_forward.1} parent=0 // pred_fallthru
    _
  // Predicated region
  $region26: #{attn_decoder_forward.1} parent=0 // pred_check
    _
  $region27: #{attn_decoder_forward.1} parent=0 // pred_check_branch
    %31 = sbr.rel (0) target = $region29
  $region28: #{attn_decoder_forward.1} parent=0 // pred_region
    _
  $region29: #{attn_decoder_forward.1} parent=0 // pred_fallthru
    _
  // Predicated region
  $region30: #{attn_decoder_forward.1} parent=0 // pred_check
    _
  $region31: #{attn_decoder_forward.1} parent=0 // pred_check_branch
    %33 = sbr.rel (0) target = $region33
  $region32: #{attn_decoder_forward.1} parent=0 // pred_region
    _
  $region33: #{attn_decoder_forward.1} parent=0 // pred_fallthru
    _
  // Predicated region
  $region34: #{attn_decoder_forward.1} parent=0 // pred_check
    _
  $region35: #{attn_decoder_forward.1} parent=0 // pred_check_branch
    %35 = sbr.rel (0) target = $region37
  $region36: #{attn_decoder_forward.1} parent=0 // pred_region
    _
  $region37: #{attn_decoder_forward.1} parent=0 // pred_fallthru
    _
  // Predicated region
  $region38: #{attn_decoder_forward.1} parent=0 // pred_check
    _
  $region39: #{attn_decoder_forward.1} parent=0 // pred_check_branch
    %37 = sbr.rel (0) target = $region41
  $region40: #{attn_decoder_forward.1} parent=0 // pred_region
    _
  $region41: #{attn_decoder_forward.1} parent=0 // pred_fallthru
    _
  // Predicated region
  $region42: #{attn_decoder_forward.1} parent=0 // pred_check
    _
  $region43: #{attn_decoder_forward.1} parent=0 // pred_check_branch
    %39 = sbr.rel (0) target = $region45
  $region44: #{attn_decoder_forward.1} parent=0 // pred_region
    _
  $region45: #{attn_decoder_forward.1} parent=0 // pred_fallthru
    _
  // Predicated region
  $region46: #{attn_decoder_forward.1} parent=0 // pred_check
    _
  $region47: #{attn_decoder_forward.1} parent=0 // pred_check_branch
    %41 = sbr.rel (0) target = $region49
  $region48: #{attn_decoder_forward.1} parent=0 // pred_region
    _
  $region49: #{attn_decoder_forward.1} parent=0 // pred_fallthru
    _
  // Predicated region
  $region50: #{attn_decoder_forward.1} parent=0 // pred_check
    _
  $region51: #{attn_decoder_forward.1} parent=0 // pred_check_branch
    %43 = sbr.rel (0) target = $region53
  $region52: #{attn_decoder_forward.1} parent=0 // pred_region
    _
  $region53: #{attn_decoder_forward.1} parent=0 // pred_fallthru
    _
  %p45 = scmp.eq.s32.totalorder 0, 0
  // Predicated region
  $region54: #{attn_decoder_forward.1} parent=0 // pred_check
    %p46 = pneg %p45
  $region55: #{attn_decoder_forward.1} parent=0 // pred_check_branch
    %48 = sbr.rel (%p46) target = $region57
  $region56: #{attn_decoder_forward.1} parent=0 // pred_region
    %v49 = vld [vmem:[%s2] sm:$0xff]
    %vm50 = vcmask 261120
    %51 = vst.msk [vmem:[#allocation2] sm:$0xff] %vm50, %v49
    %s52 = scalar_lea.vmem %s2, 8
    %v53 = vld [vmem:[%s52] sm:$0xff]
    %54 = vst.msk [vmem:[#allocation3] sm:$0xff] %vm50, %v53
  $region57: #{attn_decoder_forward.1} parent=0 // pred_fallthru
    _
  %v55 = vld [vmem:[%s1] sm:$0xff]
  %v56 = vld [vmem:[%s1 + $0x8] sm:$0xff]
  %v57 = vld [vmem:[%s1 + $0x10] sm:$0xff]
  %v58 = vld [vmem:[%s1 + $0x18] sm:$0xff]
  %v59 = vld [vmem:[%s1 + $0x20] sm:$0xff]
  %v60 = vld [vmem:[%s1 + $0x28] sm:$0xff]
  %v61 = vld [vmem:[%s1 + $0x30] sm:$0xff]
  %v62 = vld [vmem:[%s1 + $0x38] sm:$0xff]
  %v63 = vld [vmem:[%s3] sm:$0xff]
  %s64 = scalar_lea.vmem %s3, 8
  %v65 = vld [vmem:[%s64] sm:$0xff]
  %v66 = vld [vmem:[%s4] sm:$0xff]
  %v67 = vld [vmem:[%s4 + $0x8] sm:$0xff]
  %v68 = vld [vmem:[%s5] sm:$0xff]
  %v69 = vld [vmem:[%s5 + $0x8] sm:$0xff]
  %v70 = vld [vmem:[%s6] sm:$0xff]
  %v71 = vld [vmem:[%s6 + $0x8] sm:$0xff]
  %v72 = vld [vmem:[%s6 + $0x10] sm:$0xff]
  %v73 = vld [vmem:[%s6 + $0x18] sm:$0xff]
  %v74 = vld [vmem:[%s7] sm:$0xff]
  %v75 = vld [vmem:[%s7 + $0x8] sm:$0xff]
  %v76 = vld [vmem:[%s7 + $0x10] sm:$0xff]
  %v77 = vld [vmem:[%s7 + $0x18] sm:$0xff]
  %v78 = vld [vmem:[%s8] sm:$0xf]
  %v79 = vld [vmem:[%s8 + $0x4] sm:$0xf]
  %v80 = vld [vmem:[%s8 + $0x8] sm:$0xf]
  %v81 = vld [vmem:[%s8 + $0xc] sm:$0xf]
  %v82 = vld [vmem:[%s9] sm:$0xf]
  %v83 = vld [vmem:[%s9 + $0x4] sm:$0xf]
  %v84 = vld [vmem:[%s9 + $0x8] sm:$0xf]
  %v85 = vld [vmem:[%s9 + $0xc] sm:$0xf]
  %v86 = vld [vmem:[%s10] sm:$0xf]
  %v87 = vld [vmem:[%s10 + $0x4] sm:$0xf]
  %v88 = vld [vmem:[%s10 + $0x8] sm:$0xf]
  %v89 = vld [vmem:[%s10 + $0xc] sm:$0xf]
  %v90 = vld [vmem:[%s10 + $0x10] sm:$0xf]
  %v91 = vld [vmem:[%s10 + $0x14] sm:$0xf]
  %v92 = vld [vmem:[%s10 + $0x18] sm:$0xf]
  %v93 = vld [vmem:[%s10 + $0x1c] sm:$0xf]
  %v94 = vld [vmem:[%s11] sm:$0xf]
  %v95 = vld [vmem:[%s11 + $0x4] sm:$0xf]
  %v96 = vld [vmem:[%s11 + $0x8] sm:$0xf]
  %v97 = vld [vmem:[%s11 + $0xc] sm:$0xf]
  %v98 = vld [vmem:[%s12] sm:$0x1]
  %v99 = vld [vmem:[#allocation2] sm:$0xff]
  %v100 = vld [vmem:[#allocation3] sm:$0xff]
  %v101 = vld [vmem:[%s0] sm:$0xff]
  %v102 = vpack.c.bf16 %v101, %v101
  %v105 = vunpack.c.l.b16 %v68
  %v106 = vunpack.c.h.b16 %v68
  %v107 = vunpack.c.l.b16 %v69
  %v108 = vunpack.c.h.b16 %v69
  %v109 = vpack.c.b16 %v107, %v105
  %v110 = vpack.c.b16 %v108, %v106
  %vm113 = vcmask 130048
  %v115 = vsel %vm113, %v102, 0
  %117 = vmatpush.bf16.msra.mxu0 0
  %118 = vmatpush.bf16.msra.mxu0 0
  %119 = vmatpush.bf16.msra.mxu0 0
  %120 = vmatpush.bf16.msra.mxu0 0
  %121 = vmatpush.bf16.msra.mxu0 0
  %122 = vmatpush.bf16.msra.mxu0 0
  %123 = vmatpush.bf16.msra.mxu0 0
  %124 = vmatpush.bf16.msra.mxu0 %v109
  %125 = vmatmul.bf16.gmra.mxu0 %v115
  %v126 = vpop.f32.mrf.mxu0
  %v127 = vadd.f32 0.0, %v126
  %v128 = vpop.f32.mrf.mxu0
  %129 = vdwg.mxu0
  %130 = vmatpush.bf16.msra.mxu0 0
  %131 = vmatpush.bf16.msra.mxu0 0
  %132 = vmatpush.bf16.msra.mxu0 0
  %133 = vmatpush.bf16.msra.mxu0 0
  %134 = vmatpush.bf16.msra.mxu0 0
  %135 = vmatpush.bf16.msra.mxu0 0
  %136 = vmatpush.bf16.msra.mxu0 0
  %137 = vmatpush.bf16.msra.mxu0 %v110
  %138 = vmatmul.bf16.gmra.mxu0 %v115
  %v139 = vpop.f32.mrf.mxu0
  %v140 = vadd.f32 0.0, %v139
  %v141 = vpop.f32.mrf.mxu0
  %142 = vdwg.mxu0
  %v143 = vpack.c.bf16 %v99, %v99
  %v148 = vunpack.c.l.b16 %v70
  %v149 = vunpack.c.h.b16 %v70
  %v150 = vunpack.c.l.b16 %v71
  %v151 = vunpack.c.h.b16 %v71
  %v152 = vunpack.c.l.b16 %v72
  %v153 = vunpack.c.h.b16 %v72
  %v154 = vunpack.c.l.b16 %v73
  %v155 = vunpack.c.h.b16 %v73
  %v156 = vpack.c.b16 %v150, %v148
  %v157 = vpack.c.b16 %v151, %v149
  %v158 = vpack.c.b16 %v154, %v152
  %v159 = vpack.c.b16 %v155, %v153
  %vm164 = vcmask 261120
  %v166 = vsel %vm164, %v143, 0
  %168 = vmatpush.bf16.msra.mxu0 0
  %169 = vmatpush.bf16.msra.mxu0 0
  %170 = vmatpush.bf16.msra.mxu0 0
  %171 = vmatpush.bf16.msra.mxu0 0
  %172 = vmatpush.bf16.msra.mxu0 0
  %173 = vmatpush.bf16.msra.mxu0 0
  %174 = vmatpush.bf16.msra.mxu0 %v158
  %175 = vmatpush.bf16.msra.mxu0 %v156
  %176 = vmatmul.bf16.gmra.mxu0 %v166
  %v177 = vpop.f32.mrf.mxu0
  %v178 = vadd.f32 0.0, %v177
  %v179 = vpop.f32.mrf.mxu0
  %180 = vdwg.mxu0
  %181 = vmatpush.bf16.msra.mxu0 0
  %182 = vmatpush.bf16.msra.mxu0 0
  %183 = vmatpush.bf16.msra.mxu0 0
  %184 = vmatpush.bf16.msra.mxu0 0
  %185 = vmatpush.bf16.msra.mxu0 0
  %186 = vmatpush.bf16.msra.mxu0 0
  %187 = vmatpush.bf16.msra.mxu0 %v159
  %188 = vmatpush.bf16.msra.mxu0 %v157
  %189 = vmatmul.bf16.gmra.mxu0 %v166
  %v190 = vpop.f32.mrf.mxu0
  %v191 = vadd.f32 0.0, %v190
  %v192 = vpop.f32.mrf.mxu0
  %193 = vdwg.mxu0
  %s194 = scalar_select %p45, 1, 0
  %s195 = scvt.s32.f32 %s194
  %v196 = vsub.f32 %v65, %v191
  %v197 = vstv %s195
  %v198 = vmul.f32 %v196, %v197
  %v199 = vadd.f32 %v191, %v198
  %201 = vrot.lane.b32.xlu0 %v199, 96
  %v202 = vpop.permute.xlu0 %201
  %v204 = vadd.f32 %v140, %v202
  %206 = vrot.lane.b32.xlu0 %v63, 96
  %v207 = vpop.permute.xlu0 %206
  %v209 = vadd.f32 %v204, %v207
  %v210 = vtanh.pop %v209
  %vm211 = vcmask 851712
  %v212 = vsel %vm211, %v210, -inf
  %213 = vmax.xlane.f32.xlu0 %v212
  %v214 = vpop.xlane.xlu0 %213
  %v215 = vsub.f32 %v210, %v214
  %v216 = vmul.f32 %v215, 1.442695
  %v217 = vpow.pop %v216
  %219 = vrot.lane.b32.xlu0 %v217, 32
  %v220 = vpop.permute.xlu0 %219
  %vm222 = vcmask 64512
  %v223 = vsel %vm222, %v220, 0.0
  %224 = vadd.xlane.f32.xlu0 %v223
  %v225 = vpop.xlane.xlu0 %224
  %v226 = vrcp.pop %v225
  %v227 = vmul.f32 %v217, %v226
  %v228 = vlog2.pop %v225
  %v229 = vmul.f32 %v228, 0.6931472
  %v230 = vsub.f32 %v215, %v229
  %v231 = vperm.slane %v227, 0
  %v232 = vlaneseq
  %v233 = vshrl.u32 %v232, 7
  %v234 = vadd.s32 %v233, 96
  %235 = vset.pattern.permute.xlu0 %v234
  %236 = vperm.xlu0 %235, %v231
  %v237 = vpop.permute.xlu0 %236
  %v238 = vperm.slane %v227, 1
  %v239 = vlaneseq
  %v240 = vshrl.u32 %v239, 7
  %v241 = vadd.s32 %v240, 96
  %242 = vset.pattern.permute.xlu0 %v241
  %243 = vperm.xlu0 %242, %v238
  %v244 = vpop.permute.xlu0 %243
  %v245 = vperm.slane %v227, 2
  %v246 = vlaneseq
  %v247 = vshrl.u32 %v246, 7
  %v248 = vadd.s32 %v247, 96
  %249 = vset.pattern.permute.xlu0 %v248
  %250 = vperm.xlu0 %249, %v245
  %v251 = vpop.permute.xlu0 %250
  %v252 = vperm.slane %v227, 3
  %v253 = vlaneseq
  %v254 = vshrl.u32 %v253, 7
  %v255 = vadd.s32 %v254, 96
  %256 = vset.pattern.permute.xlu0 %v255
  %257 = vperm.xlu0 %256, %v252
  %v258 = vpop.permute.xlu0 %257
  %v259 = vperm.slane %v227, 4
  %v260 = vlaneseq
  %v261 = vshrl.u32 %v260, 7
  %v262 = vadd.s32 %v261, 96
  %263 = vset.pattern.permute.xlu0 %v262
  %264 = vperm.xlu0 %263, %v259
  %v265 = vpop.permute.xlu0 %264
  %v266 = vperm.slane %v227, 5
  %v267 = vlaneseq
  %v268 = vshrl.u32 %v267, 7
  %v269 = vadd.s32 %v268, 96
  %270 = vset.pattern.permute.xlu0 %v269
  %271 = vperm.xlu0 %270, %v266
  %v272 = vpop.permute.xlu0 %271
  %v273 = vperm.slane %v227, 6
  %v274 = vlaneseq
  %v275 = vshrl.u32 %v274, 7
  %v276 = vadd.s32 %v275, 96
  %277 = vset.pattern.permute.xlu0 %v276
  %278 = vperm.xlu0 %277, %v273
  %v279 = vpop.permute.xlu0 %278
  %v280 = vperm.slane %v227, 7
  %v281 = vlaneseq
  %v282 = vshrl.u32 %v281, 7
  %v283 = vadd.s32 %v282, 96
  %284 = vset.pattern.permute.xlu0 %v283
  %285 = vperm.xlu0 %284, %v280
  %v286 = vpop.permute.xlu0 %285
  %v287 = vmul.f32 %v237, %v55
  %v288 = vmul.f32 %v244, %v56
  %v289 = vmul.f32 %v251, %v57
  %v290 = vmul.f32 %v258, %v58
  %v291 = vmul.f32 %v265, %v59
  %v292 = vmul.f32 %v272, %v60
  %v293 = vmul.f32 %v279, %v61
  %v294 = vmul.f32 %v286, %v62
  %v295 = vsel %vm164, %v287, 0.0
  %v296 = vrot.slane %v295, 4
  %v297 = vadd.f32 %v295, %v296
  %v298 = vrot.slane %v297, 2
  %v299 = vadd.f32 %v297, %v298
  %v300 = vrot.slane %v299, 1
  %v301 = vadd.f32 %v299, %v300
  %v302 = vsel %vm164, %v288, 0.0
  %v303 = vrot.slane %v302, 4
  %v304 = vadd.f32 %v302, %v303
  %v305 = vrot.slane %v304, 2
  %v306 = vadd.f32 %v304, %v305
  %v307 = vrot.slane %v306, 1
  %v308 = vadd.f32 %v306, %v307
  %v309 = vsel %vm164, %v289, 0.0
  %v310 = vrot.slane %v309, 4
  %v311 = vadd.f32 %v309, %v310
  %v312 = vrot.slane %v311, 2
  %v313 = vadd.f32 %v311, %v312
  %v314 = vrot.slane %v313, 1
  %v315 = vadd.f32 %v313, %v314
  %v316 = vsel %vm164, %v290, 0.0
  %v317 = vrot.slane %v316, 4
  %v318 = vadd.f32 %v316, %v317
  %v319 = vrot.slane %v318, 2
  %v320 = vadd.f32 %v318, %v319
  %v321 = vrot.slane %v320, 1
  %v322 = vadd.f32 %v320, %v321
  %v323 = vsel %vm164, %v291, 0.0
  %v324 = vrot.slane %v323, 4
  %v325 = vadd.f32 %v323, %v324
  %v326 = vrot.slane %v325, 2
  %v327 = vadd.f32 %v325, %v326
  %v328 = vrot.slane %v327, 1
  %v329 = vadd.f32 %v327, %v328
  %v330 = vsel %vm164, %v292, 0.0
  %v331 = vrot.slane %v330, 4
  %v332 = vadd.f32 %v330, %v331
  %v333 = vrot.slane %v332, 2
  %v334 = vadd.f32 %v332, %v333
  %v335 = vrot.slane %v334, 1
  %v336 = vadd.f32 %v334, %v335
  %v337 = vsel %vm164, %v293, 0.0
  %v338 = vrot.slane %v337, 4
  %v339 = vadd.f32 %v337, %v338
  %v340 = vrot.slane %v339, 2
  %v341 = vadd.f32 %v339, %v340
  %v342 = vrot.slane %v341, 1
  %v343 = vadd.f32 %v341, %v342
  %v344 = vsel %vm164, %v294, 0.0
  %v345 = vrot.slane %v344, 4
  %v346 = vadd.f32 %v344, %v345
  %v347 = vrot.slane %v346, 2
  %v348 = vadd.f32 %v346, %v347
  %v349 = vrot.slane %v348, 1
  %v350 = vadd.f32 %v348, %v349
  %v351 = vpack.c.bf16 %v301, %v301
  %v352 = vpack.c.bf16 %v308, %v308
  %v353 = vpack.c.bf16 %v315, %v315
  %v354 = vpack.c.bf16 %v322, %v322
  %v355 = vpack.c.bf16 %v329, %v329
  %v356 = vpack.c.bf16 %v336, %v336
  %v357 = vpack.c.bf16 %v343, %v343
  %v358 = vpack.c.bf16 %v350, %v350
  %v367 = vunpack.c.l.b16 %v351
  %v368 = vunpack.c.l.b16 %v352
  %v369 = vunpack.c.l.b16 %v353
  %v370 = vunpack.c.l.b16 %v354
  %v371 = vunpack.c.l.b16 %v355
  %v372 = vunpack.c.l.b16 %v356
  %v373 = vunpack.c.l.b16 %v357
  %v374 = vunpack.c.l.b16 %v358
  %vm375 = vcmask 1041409
  %v376 = vsel %vm375, %v368, %v367
  %vm377 = vcmask 1042434
  %v378 = vsel %vm377, %v369, %v376
  %vm379 = vcmask 1043459
  %v380 = vsel %vm379, %v370, %v378
  %vm381 = vcmask 1044484
  %v382 = vsel %vm381, %v371, %v380
  %vm383 = vcmask 1045509
  %v384 = vsel %vm383, %v372, %v382
  %vm385 = vcmask 1046534
  %v386 = vsel %vm385, %v373, %v384
  %vm387 = vcmask 1047559
  %v388 = vsel %vm387, %v374, %v386
  %v389 = vpack.c.b16 %v388, %v388
  %v394 = vunpack.c.l.b16 %v74
  %v395 = vunpack.c.h.b16 %v74
  %v396 = vunpack.c.l.b16 %v75
  %v397 = vunpack.c.h.b16 %v75
  %v398 = vunpack.c.l.b16 %v76
  %v399 = vunpack.c.h.b16 %v76
  %v400 = vunpack.c.l.b16 %v77
  %v401 = vunpack.c.h.b16 %v77
  %v402 = vpack.c.b16 %v396, %v394
  %v403 = vpack.c.b16 %v397, %v395
  %v404 = vpack.c.b16 %v400, %v398
  %v405 = vpack.c.b16 %v401, %v399
  %v411 = vsel %vm164, %v389, 0
  %413 = vmatpush.bf16.msra.mxu0 0
  %414 = vmatpush.bf16.msra.mxu0 0
  %415 = vmatpush.bf16.msra.mxu0 0
  %416 = vmatpush.bf16.msra.mxu0 0
  %417 = vmatpush.bf16.msra.mxu0 0
  %418 = vmatpush.bf16.msra.mxu0 0
  %419 = vmatpush.bf16.msra.mxu0 %v404
  %420 = vmatpush.bf16.msra.mxu0 %v402
  %421 = vmatmul.bf16.gmra.mxu0 %v411
  %v422 = vpop.f32.mrf.mxu0
  %v423 = vadd.f32 0.0, %v422
  %v424 = vpop.f32.mrf.mxu0
  %425 = vdwg.mxu0
  %426 = vmatpush.bf16.msra.mxu0 0
  %427 = vmatpush.bf16.msra.mxu0 0
  %428 = vmatpush.bf16.msra.mxu0 0
  %429 = vmatpush.bf16.msra.mxu0 0
  %430 = vmatpush.bf16.msra.mxu0 0
  %431 = vmatpush.bf16.msra.mxu0 0
  %432 = vmatpush.bf16.msra.mxu0 %v405
  %433 = vmatpush.bf16.msra.mxu0 %v403
  %434 = vmatmul.bf16.gmra.mxu0 %v411
  %v435 = vpop.f32.mrf.mxu0
  %v436 = vadd.f32 0.0, %v435
  %v437 = vpop.f32.mrf.mxu0
  %438 = vdwg.mxu0
  %v439 = vadd.f32 %v127, %v423
  %v440 = vadd.f32 %v140, %v436
  %v441 = vadd.f32 %v439, %v66
  %v442 = vadd.f32 %v440, %v67
  %v443 = vadd.f32 %v441, %v178
  %v444 = vxor.u32 %v443, 2147483648
  %v445 = vmul.f32 %v444, 1.442695
  %v446 = vpow.pop %v445
  %v447 = vadd.f32 %v446, 1.0
  %v448 = vrcp.pop %v447
  %v449 = vmul.f32 %v447, %v448
  %v450 = vsub.f32 1.0, %v449
  %v451 = vmul.f32 %v448, %v450
  %v452 = vadd.f32 %v448, %v451
  %vm453 = vweird.f32 %v447
  %vm454 = vweird.f32 %v448
  %vm455 = vmor %vm453, %vm454
  %v456 = vsel %vm455, %v448, %v452
  %v457 = vand.u32 2147483647, %v447
  %vm458 = vcmp.eq.f32.partialorder %v457, 8.507059e+37
  %v459 = vand.u32 %v447, 2147483648
  %v460 = vor.u32 1.1754944e-38, %v459
  %v461 = vsel %vm458, %v460, %v456
  %v462 = vmul.f32 1.0, %v461
  %v463 = vtanh.pop %v443
  %465 = vrot.lane.b32.xlu0 %v100, 32
  %v466 = vpop.permute.xlu0 %465
  %v468 = vmul.f32 %v462, %v466
  %470 = vrot.lane.b32.xlu0 %v463, 64
  %v471 = vpop.permute.xlu0 %470
  %v473 = vmul.f32 %v462, %v471
  %475 = vrot.lane.b32.xlu0 %v473, 32
  %v476 = vpop.permute.xlu0 %475
  %v478 = vadd.f32 %v468, %v476
  %v479 = vtanh.pop %v478
  %481 = vrot.lane.b32.xlu0 %v479, 64
  %v482 = vpop.permute.xlu0 %481
  %v484 = vmul.f32 %v462, %v482
  %v485 = vpack.c.bf16 %v484, %v484
  %487 = vrot.lane.b32.xlu0 %v485, 32
  %v488 = vpop.permute.xlu0 %487
  %v493 = vunpack.c.l.b16 %v78
  %v494 = vunpack.c.l.b16 %v79
  %v495 = vunpack.c.l.b16 %v80
  %v496 = vunpack.c.l.b16 %v81
  %v497 = vpack.c.b16 %v494, %v493
  %v498 = vpack.c.b16 %v496, %v495
  %v502 = vsel %vm164, %v488, 0
  %504 = vmatpush.bf16.msra.mxu0 0
  %505 = vmatpush.bf16.msra.mxu0 0
  %506 = vmatpush.bf16.msra.mxu0 0
  %507 = vmatpush.bf16.msra.mxu0 0
  %508 = vmatpush.bf16.msra.mxu0 0
  %509 = vmatpush.bf16.msra.mxu0 0
  %510 = vmatpush.bf16.msra.mxu0 %v498
  %511 = vmatpush.bf16.msra.mxu0 %v497
  %512 = vmatmul.bf16.gmra.mxu0 %v502
  %v513 = vpop.f32.mrf.mxu0
  %v514 = vadd.f32 0.0, %v513
  %v515 = vpop.f32.mrf.mxu0
  %516 = vdwg.mxu0
  %v517 = vadd.f32 %v442, %v514
  %v518 = vtanh.pop %v517
  %v519 = vpack.c.bf16 %v517, %v517
  %v521 = vperm.slane %v98, 0
  %v527 = vunpack.c.l.b16 %v82
  %v528 = vunpack.c.l.b16 %v83
  %v529 = vunpack.c.l.b16 %v84
  %v530 = vunpack.c.l.b16 %v85
  %v531 = vpack.c.b16 %v528, %v527
  %v532 = vpack.c.b16 %v530, %v529
  %v536 = vsel %vm164, %v519, 0
  %538 = vmatpush.bf16.msra.mxu0 0
  %539 = vmatpush.bf16.msra.mxu0 0
  %540 = vmatpush.bf16.msra.mxu0 0
  %541 = vmatpush.bf16.msra.mxu0 0
  %542 = vmatpush.bf16.msra.mxu0 0
  %543 = vmatpush.bf16.msra.mxu0 0
  %544 = vmatpush.bf16.msra.mxu0 %v532
  %545 = vmatpush.bf16.msra.mxu0 %v531
  %546 = vmatmul.bf16.gmra.mxu0 %v536
  %v547 = vpop.f32.mrf.mxu0
  %v548 = vadd.f32 %v521, %v547
  %v549 = vpop.f32.mrf.mxu0
  %550 = vdwg.mxu0
  %vm551 = vcmask 97280
  %v552 = vsel %vm551, %v548, -inf
  %553 = vmax.xlane.f32.xlu0 %v552
  %v554 = vpop.xlane.xlu0 %553
  %v555 = vsub.f32 %v548, %v554
  %v556 = vmul.f32 %v555, 1.442695
  %v557 = vpow.pop %v556
  %v558 = vsel %vm551, %v557, 0.0
  %559 = vadd.xlane.f32.xlu0 %v558
  %v560 = vpop.xlane.xlu0 %559
  %v561 = vlog2.pop %v560
  %v562 = vmul.f32 %v561, 0.6931472
  %v563 = vsub.f32 %v555, %v562
  %v564 = vpack.c.bf16 %v518, %v518
  %566 = vrot.lane.b32.xlu0 %v564, 96
  %v567 = vpop.permute.xlu0 %566
  %v576 = vunpack.c.l.b16 %v86
  %v577 = vunpack.c.l.b16 %v87
  %v578 = vunpack.c.l.b16 %v88
  %v579 = vunpack.c.l.b16 %v89
  %v580 = vunpack.c.l.b16 %v90
  %v581 = vunpack.c.l.b16 %v91
  %v582 = vunpack.c.l.b16 %v92
  %v583 = vunpack.c.l.b16 %v93
  %v584 = vpack.c.b16 %v577, %v576
  %v585 = vpack.c.b16 %v579, %v578
  %v586 = vpack.c.b16 %v581, %v580
  %v587 = vpack.c.b16 %v583, %v582
  %592 = vrot.lane.b32.xlu0 %v521, 116
  %v593 = vpop.permute.xlu0 %592
  %vm595 = vcmask 523264
  %v597 = vsel %vm595, %v567, 0
  %599 = vmatpush.bf16.msra.mxu0 0
  %600 = vmatpush.bf16.msra.mxu0 0
  %601 = vmatpush.bf16.msra.mxu0 0
  %602 = vmatpush.bf16.msra.mxu0 0
  %603 = vmatpush.bf16.msra.mxu0 %v587
  %604 = vmatpush.bf16.msra.mxu0 %v586
  %605 = vmatpush.bf16.msra.mxu0 %v585
  %606 = vmatpush.bf16.msra.mxu0 %v584
  %607 = vmatmul.bf16.gmra.mxu0 %v597
  %v608 = vpop.f32.mrf.mxu0
  %v609 = vadd.f32 %v593, %v608
  %v610 = vpop.f32.mrf.mxu0
  %611 = vdwg.mxu0
  %v612 = vtanh.pop %v609
  %v613 = vpack.c.bf16 %v612, %v612
  %v618 = vunpack.c.l.b16 %v94
  %v619 = vunpack.c.l.b16 %v95
  %v620 = vunpack.c.l.b16 %v96
  %v621 = vunpack.c.l.b16 %v97
  %v622 = vpack.c.b16 %v619, %v618
  %v623 = vpack.c.b16 %v621, %v620
  %626 = vrot.lane.b32.xlu0 %v521, 84
  %v627 = vpop.permute.xlu0 %626
  %v630 = vsel %vm164, %v613, 0
  %632 = vmatpush.bf16.msra.mxu0 0
  %633 = vmatpush.bf16.msra.mxu0 0
  %634 = vmatpush.bf16.msra.mxu0 0
  %635 = vmatpush.bf16.msra.mxu0 0
  %636 = vmatpush.bf16.msra.mxu0 0
  %637 = vmatpush.bf16.msra.mxu0 0
  %638 = vmatpush.bf16.msra.mxu0 %v623
  %639 = vmatpush.bf16.msra.mxu0 %v622
  %640 = vmatmul.bf16.gmra.mxu0 %v630
  %v641 = vpop.f32.mrf.mxu0
  %v642 = vadd.f32 %v627, %v641
  %v643 = vpop.f32.mrf.mxu0
  %644 = vdwg.mxu0
  %v645 = vand.u32 2147483647, %v642
  %v646 = vsub.f32 0.0, %v645
  %v647 = vmul.f32 %v646, 1.442695
  %v648 = vpow.pop %v647
  %v649 = vadd.f32 %v648, 1.0
  %v650 = vlog2.pop %v649
  %v651 = vmul.f32 %v650, 0.6931472
  %v652 = vmin.f32 %v642, 0.0
  %v653 = vsub.f32 %v652, %v651
  %v654 = vsub.f32 0.0, %v642
  %v655 = vmin.f32 %v654, 0.0
  %v656 = vsub.f32 %v655, %v651
  %658 = vset.pattern.permute.xlu0 0
  %659 = vperm.xlu0 %658, %v656
  %v660 = vpop.permute.xlu0 %659
  %v662 = vadd.f32 %v563, %v660
  %664 = vset.pattern.permute.xlu0 0
  %665 = vperm.xlu0 %664, %v653
  %v666 = vpop.permute.xlu0 %665
  %v668 = vadd.f32 %v230, %v666
  %670 = vrot.lane.b32.xlu0 %v484, 32
  %v671 = vpop.permute.xlu0 %670
  %674 = vrot.lane.b32.xlu0 %v662, 64
  %v675 = vpop.permute.xlu0 %674
  %678 = vrot.lane.b32.xlu0 %v668, 108
  %v679 = vpop.permute.xlu0 %678
  %v681 = vsel %vm164, %v671, %v478
  %v682 = vsel %vm595, %v681, %v675
  %vm683 = vcmask 621568
  %v684 = vsel %vm683, %v682, %v679
  %vm685 = vcmask 687104
  %v686 = vsel %vm685, %v684, 0.0
  %687 = vst [vmem:[%s13] sm:$0xff] %v686
  %688 = vst.msk [vmem:[#allocation2] sm:$0xff] %vm164, %v671
  %690 = vrot.lane.b32.xlu0 %v478, 96
  %v691 = vpop.permute.xlu0 %690
  %693 = vst.msk [vmem:[#allocation3] sm:$0xff] %vm164, %v691
  // Predicated region
  $region58: #{attn_decoder_forward.1} parent=0 // pred_check
    _
  $region59: #{attn_decoder_forward.1} parent=0 // pred_check_branch
    %695 = sbr.rel (0) target = $region61
  $region60: #{attn_decoder_forward.1} parent=0 // pred_region
    _
  $region61: #{attn_decoder_forward.1} parent=0 // pred_fallthru
    _
  // Predicated region
  $region62: #{attn_decoder_forward.1} parent=0 // pred_check
    _
  $region63: #{attn_decoder_forward.1} parent=0 // pred_check_branch
    %697 = sbr.rel (0) target = $region65
  $region64: #{attn_decoder_forward.1} parent=0 // pred_region
    _
  $region65: #{attn_decoder_forward.1} parent=0 // pred_fallthru
    _

</llo_original>
